<compile_context>
chip_gen: v6e
topology: v6e:2x2x1
jax: 0.10.0
libtpu: 0.0.40
codegen_flags: <defaults>
</compile_context>

<pallas_src>
import functools

import jax
import jax.numpy as jnp
from jax.experimental import pallas as pl
from jax.experimental.pallas import tpu as pltpu


def _round_up(n, m):
    return ((n + m - 1) // m) * m


def _vpu_linear(x, w, b):
    """y = x @ w + b via VPU broadcast-FMAs (no MXU round trip).

    x: (B, K) f32, w: (K, N) f32, b: (1, N) f32 -> (B, N) f32.
    K is tiny here (<= hidden_len), so the loop is statically unrolled.
    """
    bsz = x.shape[0]
    k_dim, n_dim = w.shape
    acc = jnp.broadcast_to(b, (bsz, n_dim))
    for k in range(k_dim):
        acc = acc + x[:, k:k + 1] * w[k:k + 1, :]
    return acc


def _discriminator_kernel(x_ref, p_ref, o_ref, *, meta):
    in_len = meta["in_len"]
    hidden = meta["hidden"]
    out_cols = meta["out_cols"]

    x = x_ref[...]                                    # (block_b, in_len) f32

    # layer1: Linear(in_len, hidden) + LeakyReLU(0.2) (+ Dropout -> identity)
    w1 = p_ref[meta["r_w1"]:meta["r_w1"] + in_len, 0:hidden]
    b1 = p_ref[meta["r_b1"]:meta["r_b1"] + 1, 0:hidden]
    h = _vpu_linear(x, w1, b1)
    h = jnp.where(h > 0, h, 0.2 * h)

    # layer2: Linear(hidden, hidden) + LeakyReLU(0.2) (+ Dropout -> identity)
    w2 = p_ref[meta["r_w2"]:meta["r_w2"] + hidden, 0:hidden]
    b2 = p_ref[meta["r_b2"]:meta["r_b2"] + 1, 0:hidden]
    h = _vpu_linear(h, w2, b2)
    h = jnp.where(h > 0, h, 0.2 * h)

    # layer3: Linear(hidden, out) + Sigmoid.  w3/b3 are zero-padded to a full
    # 128-lane width, so h is lane-dense; pad lanes hold sigmoid(0)=0.5 and
    # are sliced off in the wrapper.
    w3 = p_ref[meta["r_w3"]:meta["r_w3"] + hidden, 0:out_cols]
    b3 = p_ref[meta["r_b3"]:meta["r_b3"] + 1, 0:out_cols]
    h = _vpu_linear(h, w3, b3)                        # (block_b, out_cols)

    # sigmoid via EUP exp + approx EUP reciprocal (keeps divide off the VALU)
    o_ref[...] = pl.reciprocal(1.0 + jnp.exp(-h), approx=True)


def pack_params(params):
    """Pack w1,b1,w2,b2,w3,b3 into one lane-padded f32 buffer (single DMA)."""
    w1 = jnp.asarray(params["w1"], jnp.float32)
    b1 = jnp.asarray(params["b1"], jnp.float32).reshape(1, -1)
    w2 = jnp.asarray(params["w2"], jnp.float32)
    b2 = jnp.asarray(params["b2"], jnp.float32).reshape(1, -1)
    w3 = jnp.asarray(params["w3"], jnp.float32)
    b3 = jnp.asarray(params["b3"], jnp.float32).reshape(1, -1)

    in_len, hidden = w1.shape
    out_len = w3.shape[1]
    out_cols = _round_up(out_len, 128)
    lanes = max(128, _round_up(hidden, 128), out_cols)

    r_w1 = 0
    r_b1 = r_w1 + _round_up(in_len, 8)
    r_w2 = r_b1 + 8
    r_b2 = r_w2 + _round_up(hidden, 8)
    r_w3 = r_b2 + 8
    r_b3 = r_w3 + _round_up(hidden, 8)
    rows = r_b3 + 8

    buf = jnp.zeros((rows, lanes), jnp.float32)
    buf = buf.at[r_w1:r_w1 + in_len, 0:hidden].set(w1)
    buf = buf.at[r_b1:r_b1 + 1, 0:hidden].set(b1)
    buf = buf.at[r_w2:r_w2 + hidden, 0:hidden].set(w2)
    buf = buf.at[r_b2:r_b2 + 1, 0:hidden].set(b2)
    buf = buf.at[r_w3:r_w3 + hidden, 0:out_len].set(w3)
    buf = buf.at[r_b3:r_b3 + 1, 0:out_len].set(b3)

    meta = dict(in_len=in_len, hidden=hidden, out_len=out_len,
                out_cols=out_cols, rows=rows, lanes=lanes,
                r_w1=r_w1, r_b1=r_b1, r_w2=r_w2, r_b2=r_b2,
                r_w3=r_w3, r_b3=r_b3)
    return buf, meta


@functools.partial(jax.jit, static_argnames=("block_b",))
def discriminator_forward(x, params, *, block_b=512):
    """x: (B, input_len); params: dict of w1,b1,w2,b2,w3,b3
    (weights stored (in, out), biases (1, out))."""
    x = jnp.asarray(x, jnp.float32)
    B = x.shape[0]
    packed, meta = pack_params(params)

    # Batch tile: multiple of 8 sublanes, capped at block_b rows.
    bb = min(_round_up(block_b, 8), _round_up(B, 8))
    b_pad = _round_up(B, bb)
    if b_pad != B:
        x = jnp.pad(x, ((0, b_pad - B), (0, 0)))

    kernel = functools.partial(_discriminator_kernel, meta=meta)
    out = pl.pallas_call(
        kernel,
        grid=(b_pad // bb,),
        in_specs=[
            pl.BlockSpec((bb, meta["in_len"]), lambda i: (i, 0)),
            # packed params: constant index_map -> fetched once, VMEM-resident
            pl.BlockSpec((meta["rows"], meta["lanes"]), lambda i: (0, 0)),
        ],
        out_specs=pl.BlockSpec((bb, meta["out_cols"]), lambda i: (i, 0)),
        out_shape=jax.ShapeDtypeStruct((b_pad, meta["out_cols"]), jnp.float32),
        compiler_params=pltpu.CompilerParams(
            dimension_semantics=("parallel",)),
    )(x, packed)
    return out[:B, :meta["out_len"]]


def init_params(key, input_len=2, hidden_len=16, output_len=1):
    """PyTorch-default-like Linear init (uniform(-1/sqrt(fan_in), 1/sqrt(fan_in))).
    Weights stored (in, out) (transpose of PyTorch's (out, in)); biases (1, out)."""
    def linear(k, fan_in, fan_out):
        kw, kb = jax.random.split(k)
        bound = 1.0 / (fan_in ** 0.5)
        w = jax.random.uniform(kw, (fan_in, fan_out), jnp.float32, -bound, bound)
        b = jax.random.uniform(kb, (1, fan_out), jnp.float32, -bound, bound)
        return w, b

    k1, k2, k3 = jax.random.split(key, 3)
    w1, b1 = linear(k1, input_len, hidden_len)
    w2, b2 = linear(k2, hidden_len, hidden_len)
    w3, b3 = linear(k3, hidden_len, output_len)
    return {"w1": w1, "b1": b1, "w2": w2, "b2": b2, "w3": w3, "b3": b3}


def _reference_forward(x, p):
    h1 = x @ p["w1"] + p["b1"]
    h1 = jnp.where(h1 > 0, h1, 0.2 * h1)
    h2 = h1 @ p["w2"] + p["b2"]
    h2 = jnp.where(h2 > 0, h2, 0.2 * h2)
    h3 = h2 @ p["w3"] + p["b3"]
    return jax.nn.sigmoid(h3)


if __name__ == "__main__":
    key = jax.random.PRNGKey(0)
    kx, kp, kx2 = jax.random.split(key, 3)

    B, INPUT_LEN, HIDDEN_LEN, OUTPUT_LEN = 8, 2, 16, 1
    x = jax.random.normal(kx, (B, INPUT_LEN), dtype=jnp.float32)
    params = init_params(kp, INPUT_LEN, HIDDEN_LEN, OUTPUT_LEN)

    out = jax.block_until_ready(discriminator_forward(x, params))
    ref = _reference_forward(x, params)
    assert out.shape == (B, OUTPUT_LEN)
    # tolerance covers the approx (EUP vrcp) reciprocal in the sigmoid
    assert jnp.allclose(out, ref, atol=5e-3, rtol=5e-3), \
        float(jnp.max(jnp.abs(out - ref)))

    # Larger, non-multiple-of-tile batch exercises the gridded / padded path.
    B2 = 300
    x2 = jax.random.normal(kx2, (B2, INPUT_LEN), dtype=jnp.float32)
    out2 = jax.block_until_ready(discriminator_forward(x2, params, block_b=128))
    ref2 = _reference_forward(x2, params)
    assert out2.shape == (B2, OUTPUT_LEN)
    assert jnp.allclose(out2, ref2, atol=5e-3, rtol=5e-3), \
        float(jnp.max(jnp.abs(out2 - ref2)))

    print("KERNEL_OK")
</pallas_src>

<mosaic_0001>
module attributes {stable_mosaic.version = 11 : i64} {
  func.func @_discriminator_kernel(%arg0: i32, %arg1: memref<8x2xf32, #tpu.memory_space<vmem>>, %arg2: memref<64x128xf32, #tpu.memory_space<vmem>>, %arg3: memref<8x128xf32, #tpu.memory_space<vmem>>) attributes {dimension_semantics = [#tpu.dimension_semantics<parallel>], iteration_bounds = array<i64: 1>, scalar_prefetch = 0 : i64, scratch_operands = 0 : i64, tpu.core_type = #tpu.core_type<tc>, window_params = [{transform_indices = @transform_0, window_bounds = array<i64: 8, 2>}, {pipeline_mode = #tpu.pipeline_mode<synchronous>, transform_indices = @transform_1, window_bounds = array<i64: 64, 128>}, {transform_indices = @transform_2, window_bounds = array<i64: 8, 128>}]} {
    %c0 = arith.constant 0 : index
    %c0_0 = arith.constant 0 : index
    %0 = vector.load %arg1[%c0, %c0_0] : memref<8x2xf32, #tpu.memory_space<vmem>>, vector<8x2xf32>
    %c0_1 = arith.constant 0 : index
    %c0_2 = arith.constant 0 : index
    %1 = vector.load %arg2[%c0_1, %c0_2] : memref<64x128xf32, #tpu.memory_space<vmem>>, vector<2x16xf32>
    %c8 = arith.constant 8 : index
    %c0_3 = arith.constant 0 : index
    %2 = vector.load %arg2[%c8, %c0_3] : memref<64x128xf32, #tpu.memory_space<vmem>>, vector<1x16xf32>
    %3 = vector.shape_cast %2 : vector<1x16xf32> to vector<1x16xf32>
    %4 = vector.broadcast %3 : vector<1x16xf32> to vector<8x16xf32>
    %5 = vector.extract_strided_slice %0 {offsets = [0, 0], sizes = [8, 1], strides = [1, 1]} : vector<8x2xf32> to vector<8x1xf32>
    %6 = vector.extract_strided_slice %1 {offsets = [0, 0], sizes = [1, 16], strides = [1, 1]} : vector<2x16xf32> to vector<1x16xf32>
    %7 = vector.broadcast %5 : vector<8x1xf32> to vector<8x16xf32>
    %8 = vector.broadcast %6 : vector<1x16xf32> to vector<8x16xf32>
    %9 = arith.mulf %7, %8 : vector<8x16xf32>
    %10 = arith.addf %4, %9 : vector<8x16xf32>
    %11 = vector.extract_strided_slice %0 {offsets = [0, 1], sizes = [8, 1], strides = [1, 1]} : vector<8x2xf32> to vector<8x1xf32>
    %12 = vector.extract_strided_slice %1 {offsets = [1, 0], sizes = [1, 16], strides = [1, 1]} : vector<2x16xf32> to vector<1x16xf32>
    %13 = vector.broadcast %11 : vector<8x1xf32> to vector<8x16xf32>
    %14 = vector.broadcast %12 : vector<1x16xf32> to vector<8x16xf32>
    %15 = arith.mulf %13, %14 : vector<8x16xf32>
    %16 = arith.addf %10, %15 : vector<8x16xf32>
    %cst = arith.constant 0.000000e+00 : f32
    %17 = vector.broadcast %cst : f32 to vector<8x16xf32>
    %18 = arith.cmpf ogt, %16, %17 : vector<8x16xf32>
    %cst_4 = arith.constant 2.000000e-01 : f32
    %19 = vector.broadcast %cst_4 : f32 to vector<8x16xf32>
    %20 = arith.mulf %19, %16 : vector<8x16xf32>
    %21 = arith.select %18, %16, %20 : vector<8x16xi1>, vector<8x16xf32>
    %c16 = arith.constant 16 : index
    %c0_5 = arith.constant 0 : index
    %22 = vector.load %arg2[%c16, %c0_5] : memref<64x128xf32, #tpu.memory_space<vmem>>, vector<16x16xf32>
    %c32 = arith.constant 32 : index
    %c0_6 = arith.constant 0 : index
    %23 = vector.load %arg2[%c32, %c0_6] : memref<64x128xf32, #tpu.memory_space<vmem>>, vector<1x16xf32>
    %24 = vector.shape_cast %23 : vector<1x16xf32> to vector<1x16xf32>
    %25 = vector.broadcast %24 : vector<1x16xf32> to vector<8x16xf32>
    %26 = vector.extract_strided_slice %21 {offsets = [0, 0], sizes = [8, 1], strides = [1, 1]} : vector<8x16xf32> to vector<8x1xf32>
    %27 = vector.extract_strided_slice %22 {offsets = [0, 0], sizes = [1, 16], strides = [1, 1]} : vector<16x16xf32> to vector<1x16xf32>
    %28 = vector.broadcast %26 : vector<8x1xf32> to vector<8x16xf32>
    %29 = vector.broadcast %27 : vector<1x16xf32> to vector<8x16xf32>
    %30 = arith.mulf %28, %29 : vector<8x16xf32>
    %31 = arith.addf %25, %30 : vector<8x16xf32>
    %32 = vector.extract_strided_slice %21 {offsets = [0, 1], sizes = [8, 1], strides = [1, 1]} : vector<8x16xf32> to vector<8x1xf32>
    %33 = vector.extract_strided_slice %22 {offsets = [1, 0], sizes = [1, 16], strides = [1, 1]} : vector<16x16xf32> to vector<1x16xf32>
    %34 = vector.broadcast %32 : vector<8x1xf32> to vector<8x16xf32>
    %35 = vector.broadcast %33 : vector<1x16xf32> to vector<8x16xf32>
    %36 = arith.mulf %34, %35 : vector<8x16xf32>
    %37 = arith.addf %31, %36 : vector<8x16xf32>
    %38 = vector.extract_strided_slice %21 {offsets = [0, 2], sizes = [8, 1], strides = [1, 1]} : vector<8x16xf32> to vector<8x1xf32>
    %39 = vector.extract_strided_slice %22 {offsets = [2, 0], sizes = [1, 16], strides = [1, 1]} : vector<16x16xf32> to vector<1x16xf32>
    %40 = vector.broadcast %38 : vector<8x1xf32> to vector<8x16xf32>
    %41 = vector.broadcast %39 : vector<1x16xf32> to vector<8x16xf32>
    %42 = arith.mulf %40, %41 : vector<8x16xf32>
    %43 = arith.addf %37, %42 : vector<8x16xf32>
    %44 = vector.extract_strided_slice %21 {offsets = [0, 3], sizes = [8, 1], strides = [1, 1]} : vector<8x16xf32> to vector<8x1xf32>
    %45 = vector.extract_strided_slice %22 {offsets = [3, 0], sizes = [1, 16], strides = [1, 1]} : vector<16x16xf32> to vector<1x16xf32>
    %46 = vector.broadcast %44 : vector<8x1xf32> to vector<8x16xf32>
    %47 = vector.broadcast %45 : vector<1x16xf32> to vector<8x16xf32>
    %48 = arith.mulf %46, %47 : vector<8x16xf32>
    %49 = arith.addf %43, %48 : vector<8x16xf32>
    %50 = vector.extract_strided_slice %21 {offsets = [0, 4], sizes = [8, 1], strides = [1, 1]} : vector<8x16xf32> to vector<8x1xf32>
    %51 = vector.extract_strided_slice %22 {offsets = [4, 0], sizes = [1, 16], strides = [1, 1]} : vector<16x16xf32> to vector<1x16xf32>
    %52 = vector.broadcast %50 : vector<8x1xf32> to vector<8x16xf32>
    %53 = vector.broadcast %51 : vector<1x16xf32> to vector<8x16xf32>
    %54 = arith.mulf %52, %53 : vector<8x16xf32>
    %55 = arith.addf %49, %54 : vector<8x16xf32>
    %56 = vector.extract_strided_slice %21 {offsets = [0, 5], sizes = [8, 1], strides = [1, 1]} : vector<8x16xf32> to vector<8x1xf32>
    %57 = vector.extract_strided_slice %22 {offsets = [5, 0], sizes = [1, 16], strides = [1, 1]} : vector<16x16xf32> to vector<1x16xf32>
    %58 = vector.broadcast %56 : vector<8x1xf32> to vector<8x16xf32>
    %59 = vector.broadcast %57 : vector<1x16xf32> to vector<8x16xf32>
    %60 = arith.mulf %58, %59 : vector<8x16xf32>
    %61 = arith.addf %55, %60 : vector<8x16xf32>
    %62 = vector.extract_strided_slice %21 {offsets = [0, 6], sizes = [8, 1], strides = [1, 1]} : vector<8x16xf32> to vector<8x1xf32>
    %63 = vector.extract_strided_slice %22 {offsets = [6, 0], sizes = [1, 16], strides = [1, 1]} : vector<16x16xf32> to vector<1x16xf32>
    %64 = vector.broadcast %62 : vector<8x1xf32> to vector<8x16xf32>
    %65 = vector.broadcast %63 : vector<1x16xf32> to vector<8x16xf32>
    %66 = arith.mulf %64, %65 : vector<8x16xf32>
    %67 = arith.addf %61, %66 : vector<8x16xf32>
    %68 = vector.extract_strided_slice %21 {offsets = [0, 7], sizes = [8, 1], strides = [1, 1]} : vector<8x16xf32> to vector<8x1xf32>
    %69 = vector.extract_strided_slice %22 {offsets = [7, 0], sizes = [1, 16], strides = [1, 1]} : vector<16x16xf32> to vector<1x16xf32>
    %70 = vector.broadcast %68 : vector<8x1xf32> to vector<8x16xf32>
    %71 = vector.broadcast %69 : vector<1x16xf32> to vector<8x16xf32>
    %72 = arith.mulf %70, %71 : vector<8x16xf32>
    %73 = arith.addf %67, %72 : vector<8x16xf32>
    %74 = vector.extract_strided_slice %21 {offsets = [0, 8], sizes = [8, 1], strides = [1, 1]} : vector<8x16xf32> to vector<8x1xf32>
    %75 = vector.extract_strided_slice %22 {offsets = [8, 0], sizes = [1, 16], strides = [1, 1]} : vector<16x16xf32> to vector<1x16xf32>
    %76 = vector.broadcast %74 : vector<8x1xf32> to vector<8x16xf32>
    %77 = vector.broadcast %75 : vector<1x16xf32> to vector<8x16xf32>
    %78 = arith.mulf %76, %77 : vector<8x16xf32>
    %79 = arith.addf %73, %78 : vector<8x16xf32>
    %80 = vector.extract_strided_slice %21 {offsets = [0, 9], sizes = [8, 1], strides = [1, 1]} : vector<8x16xf32> to vector<8x1xf32>
    %81 = vector.extract_strided_slice %22 {offsets = [9, 0], sizes = [1, 16], strides = [1, 1]} : vector<16x16xf32> to vector<1x16xf32>
    %82 = vector.broadcast %80 : vector<8x1xf32> to vector<8x16xf32>
    %83 = vector.broadcast %81 : vector<1x16xf32> to vector<8x16xf32>
    %84 = arith.mulf %82, %83 : vector<8x16xf32>
    %85 = arith.addf %79, %84 : vector<8x16xf32>
    %86 = vector.extract_strided_slice %21 {offsets = [0, 10], sizes = [8, 1], strides = [1, 1]} : vector<8x16xf32> to vector<8x1xf32>
    %87 = vector.extract_strided_slice %22 {offsets = [10, 0], sizes = [1, 16], strides = [1, 1]} : vector<16x16xf32> to vector<1x16xf32>
    %88 = vector.broadcast %86 : vector<8x1xf32> to vector<8x16xf32>
    %89 = vector.broadcast %87 : vector<1x16xf32> to vector<8x16xf32>
    %90 = arith.mulf %88, %89 : vector<8x16xf32>
    %91 = arith.addf %85, %90 : vector<8x16xf32>
    %92 = vector.extract_strided_slice %21 {offsets = [0, 11], sizes = [8, 1], strides = [1, 1]} : vector<8x16xf32> to vector<8x1xf32>
    %93 = vector.extract_strided_slice %22 {offsets = [11, 0], sizes = [1, 16], strides = [1, 1]} : vector<16x16xf32> to vector<1x16xf32>
    %94 = vector.broadcast %92 : vector<8x1xf32> to vector<8x16xf32>
    %95 = vector.broadcast %93 : vector<1x16xf32> to vector<8x16xf32>
    %96 = arith.mulf %94, %95 : vector<8x16xf32>
    %97 = arith.addf %91, %96 : vector<8x16xf32>
    %98 = vector.extract_strided_slice %21 {offsets = [0, 12], sizes = [8, 1], strides = [1, 1]} : vector<8x16xf32> to vector<8x1xf32>
    %99 = vector.extract_strided_slice %22 {offsets = [12, 0], sizes = [1, 16], strides = [1, 1]} : vector<16x16xf32> to vector<1x16xf32>
    %100 = vector.broadcast %98 : vector<8x1xf32> to vector<8x16xf32>
    %101 = vector.broadcast %99 : vector<1x16xf32> to vector<8x16xf32>
    %102 = arith.mulf %100, %101 : vector<8x16xf32>
    %103 = arith.addf %97, %102 : vector<8x16xf32>
    %104 = vector.extract_strided_slice %21 {offsets = [0, 13], sizes = [8, 1], strides = [1, 1]} : vector<8x16xf32> to vector<8x1xf32>
    %105 = vector.extract_strided_slice %22 {offsets = [13, 0], sizes = [1, 16], strides = [1, 1]} : vector<16x16xf32> to vector<1x16xf32>
    %106 = vector.broadcast %104 : vector<8x1xf32> to vector<8x16xf32>
    %107 = vector.broadcast %105 : vector<1x16xf32> to vector<8x16xf32>
    %108 = arith.mulf %106, %107 : vector<8x16xf32>
    %109 = arith.addf %103, %108 : vector<8x16xf32>
    %110 = vector.extract_strided_slice %21 {offsets = [0, 14], sizes = [8, 1], strides = [1, 1]} : vector<8x16xf32> to vector<8x1xf32>
    %111 = vector.extract_strided_slice %22 {offsets = [14, 0], sizes = [1, 16], strides = [1, 1]} : vector<16x16xf32> to vector<1x16xf32>
    %112 = vector.broadcast %110 : vector<8x1xf32> to vector<8x16xf32>
    %113 = vector.broadcast %111 : vector<1x16xf32> to vector<8x16xf32>
    %114 = arith.mulf %112, %113 : vector<8x16xf32>
    %115 = arith.addf %109, %114 : vector<8x16xf32>
    %116 = vector.extract_strided_slice %21 {offsets = [0, 15], sizes = [8, 1], strides = [1, 1]} : vector<8x16xf32> to vector<8x1xf32>
    %117 = vector.extract_strided_slice %22 {offsets = [15, 0], sizes = [1, 16], strides = [1, 1]} : vector<16x16xf32> to vector<1x16xf32>
    %118 = vector.broadcast %116 : vector<8x1xf32> to vector<8x16xf32>
    %119 = vector.broadcast %117 : vector<1x16xf32> to vector<8x16xf32>
    %120 = arith.mulf %118, %119 : vector<8x16xf32>
    %121 = arith.addf %115, %120 : vector<8x16xf32>
    %cst_7 = arith.constant 0.000000e+00 : f32
    %122 = vector.broadcast %cst_7 : f32 to vector<8x16xf32>
    %123 = arith.cmpf ogt, %121, %122 : vector<8x16xf32>
    %cst_8 = arith.constant 2.000000e-01 : f32
    %124 = vector.broadcast %cst_8 : f32 to vector<8x16xf32>
    %125 = arith.mulf %124, %121 : vector<8x16xf32>
    %126 = arith.select %123, %121, %125 : vector<8x16xi1>, vector<8x16xf32>
    %c40 = arith.constant 40 : index
    %c0_9 = arith.constant 0 : index
    %127 = vector.load %arg2[%c40, %c0_9] : memref<64x128xf32, #tpu.memory_space<vmem>>, vector<16x128xf32>
    %c56 = arith.constant 56 : index
    %c0_10 = arith.constant 0 : index
    %128 = vector.load %arg2[%c56, %c0_10] : memref<64x128xf32, #tpu.memory_space<vmem>>, vector<1x128xf32>
    %129 = vector.shape_cast %128 : vector<1x128xf32> to vector<1x128xf32>
    %130 = vector.broadcast %129 : vector<1x128xf32> to vector<8x128xf32>
    %131 = vector.extract_strided_slice %126 {offsets = [0, 0], sizes = [8, 1], strides = [1, 1]} : vector<8x16xf32> to vector<8x1xf32>
    %132 = vector.extract_strided_slice %127 {offsets = [0, 0], sizes = [1, 128], strides = [1, 1]} : vector<16x128xf32> to vector<1x128xf32>
    %133 = vector.broadcast %131 : vector<8x1xf32> to vector<8x128xf32>
    %134 = vector.broadcast %132 : vector<1x128xf32> to vector<8x128xf32>
    %135 = arith.mulf %133, %134 : vector<8x128xf32>
    %136 = arith.addf %130, %135 : vector<8x128xf32>
    %137 = vector.extract_strided_slice %126 {offsets = [0, 1], sizes = [8, 1], strides = [1, 1]} : vector<8x16xf32> to vector<8x1xf32>
    %138 = vector.extract_strided_slice %127 {offsets = [1, 0], sizes = [1, 128], strides = [1, 1]} : vector<16x128xf32> to vector<1x128xf32>
    %139 = vector.broadcast %137 : vector<8x1xf32> to vector<8x128xf32>
    %140 = vector.broadcast %138 : vector<1x128xf32> to vector<8x128xf32>
    %141 = arith.mulf %139, %140 : vector<8x128xf32>
    %142 = arith.addf %136, %141 : vector<8x128xf32>
    %143 = vector.extract_strided_slice %126 {offsets = [0, 2], sizes = [8, 1], strides = [1, 1]} : vector<8x16xf32> to vector<8x1xf32>
    %144 = vector.extract_strided_slice %127 {offsets = [2, 0], sizes = [1, 128], strides = [1, 1]} : vector<16x128xf32> to vector<1x128xf32>
    %145 = vector.broadcast %143 : vector<8x1xf32> to vector<8x128xf32>
    %146 = vector.broadcast %144 : vector<1x128xf32> to vector<8x128xf32>
    %147 = arith.mulf %145, %146 : vector<8x128xf32>
    %148 = arith.addf %142, %147 : vector<8x128xf32>
    %149 = vector.extract_strided_slice %126 {offsets = [0, 3], sizes = [8, 1], strides = [1, 1]} : vector<8x16xf32> to vector<8x1xf32>
    %150 = vector.extract_strided_slice %127 {offsets = [3, 0], sizes = [1, 128], strides = [1, 1]} : vector<16x128xf32> to vector<1x128xf32>
    %151 = vector.broadcast %149 : vector<8x1xf32> to vector<8x128xf32>
    %152 = vector.broadcast %150 : vector<1x128xf32> to vector<8x128xf32>
    %153 = arith.mulf %151, %152 : vector<8x128xf32>
    %154 = arith.addf %148, %153 : vector<8x128xf32>
    %155 = vector.extract_strided_slice %126 {offsets = [0, 4], sizes = [8, 1], strides = [1, 1]} : vector<8x16xf32> to vector<8x1xf32>
    %156 = vector.extract_strided_slice %127 {offsets = [4, 0], sizes = [1, 128], strides = [1, 1]} : vector<16x128xf32> to vector<1x128xf32>
    %157 = vector.broadcast %155 : vector<8x1xf32> to vector<8x128xf32>
    %158 = vector.broadcast %156 : vector<1x128xf32> to vector<8x128xf32>
    %159 = arith.mulf %157, %158 : vector<8x128xf32>
    %160 = arith.addf %154, %159 : vector<8x128xf32>
    %161 = vector.extract_strided_slice %126 {offsets = [0, 5], sizes = [8, 1], strides = [1, 1]} : vector<8x16xf32> to vector<8x1xf32>
    %162 = vector.extract_strided_slice %127 {offsets = [5, 0], sizes = [1, 128], strides = [1, 1]} : vector<16x128xf32> to vector<1x128xf32>
    %163 = vector.broadcast %161 : vector<8x1xf32> to vector<8x128xf32>
    %164 = vector.broadcast %162 : vector<1x128xf32> to vector<8x128xf32>
    %165 = arith.mulf %163, %164 : vector<8x128xf32>
    %166 = arith.addf %160, %165 : vector<8x128xf32>
    %167 = vector.extract_strided_slice %126 {offsets = [0, 6], sizes = [8, 1], strides = [1, 1]} : vector<8x16xf32> to vector<8x1xf32>
    %168 = vector.extract_strided_slice %127 {offsets = [6, 0], sizes = [1, 128], strides = [1, 1]} : vector<16x128xf32> to vector<1x128xf32>
    %169 = vector.broadcast %167 : vector<8x1xf32> to vector<8x128xf32>
    %170 = vector.broadcast %168 : vector<1x128xf32> to vector<8x128xf32>
    %171 = arith.mulf %169, %170 : vector<8x128xf32>
    %172 = arith.addf %166, %171 : vector<8x128xf32>
    %173 = vector.extract_strided_slice %126 {offsets = [0, 7], sizes = [8, 1], strides = [1, 1]} : vector<8x16xf32> to vector<8x1xf32>
    %174 = vector.extract_strided_slice %127 {offsets = [7, 0], sizes = [1, 128], strides = [1, 1]} : vector<16x128xf32> to vector<1x128xf32>
    %175 = vector.broadcast %173 : vector<8x1xf32> to vector<8x128xf32>
    %176 = vector.broadcast %174 : vector<1x128xf32> to vector<8x128xf32>
    %177 = arith.mulf %175, %176 : vector<8x128xf32>
    %178 = arith.addf %172, %177 : vector<8x128xf32>
    %179 = vector.extract_strided_slice %126 {offsets = [0, 8], sizes = [8, 1], strides = [1, 1]} : vector<8x16xf32> to vector<8x1xf32>
    %180 = vector.extract_strided_slice %127 {offsets = [8, 0], sizes = [1, 128], strides = [1, 1]} : vector<16x128xf32> to vector<1x128xf32>
    %181 = vector.broadcast %179 : vector<8x1xf32> to vector<8x128xf32>
    %182 = vector.broadcast %180 : vector<1x128xf32> to vector<8x128xf32>
    %183 = arith.mulf %181, %182 : vector<8x128xf32>
    %184 = arith.addf %178, %183 : vector<8x128xf32>
    %185 = vector.extract_strided_slice %126 {offsets = [0, 9], sizes = [8, 1], strides = [1, 1]} : vector<8x16xf32> to vector<8x1xf32>
    %186 = vector.extract_strided_slice %127 {offsets = [9, 0], sizes = [1, 128], strides = [1, 1]} : vector<16x128xf32> to vector<1x128xf32>
    %187 = vector.broadcast %185 : vector<8x1xf32> to vector<8x128xf32>
    %188 = vector.broadcast %186 : vector<1x128xf32> to vector<8x128xf32>
    %189 = arith.mulf %187, %188 : vector<8x128xf32>
    %190 = arith.addf %184, %189 : vector<8x128xf32>
    %191 = vector.extract_strided_slice %126 {offsets = [0, 10], sizes = [8, 1], strides = [1, 1]} : vector<8x16xf32> to vector<8x1xf32>
    %192 = vector.extract_strided_slice %127 {offsets = [10, 0], sizes = [1, 128], strides = [1, 1]} : vector<16x128xf32> to vector<1x128xf32>
    %193 = vector.broadcast %191 : vector<8x1xf32> to vector<8x128xf32>
    %194 = vector.broadcast %192 : vector<1x128xf32> to vector<8x128xf32>
    %195 = arith.mulf %193, %194 : vector<8x128xf32>
    %196 = arith.addf %190, %195 : vector<8x128xf32>
    %197 = vector.extract_strided_slice %126 {offsets = [0, 11], sizes = [8, 1], strides = [1, 1]} : vector<8x16xf32> to vector<8x1xf32>
    %198 = vector.extract_strided_slice %127 {offsets = [11, 0], sizes = [1, 128], strides = [1, 1]} : vector<16x128xf32> to vector<1x128xf32>
    %199 = vector.broadcast %197 : vector<8x1xf32> to vector<8x128xf32>
    %200 = vector.broadcast %198 : vector<1x128xf32> to vector<8x128xf32>
    %201 = arith.mulf %199, %200 : vector<8x128xf32>
    %202 = arith.addf %196, %201 : vector<8x128xf32>
    %203 = vector.extract_strided_slice %126 {offsets = [0, 12], sizes = [8, 1], strides = [1, 1]} : vector<8x16xf32> to vector<8x1xf32>
    %204 = vector.extract_strided_slice %127 {offsets = [12, 0], sizes = [1, 128], strides = [1, 1]} : vector<16x128xf32> to vector<1x128xf32>
    %205 = vector.broadcast %203 : vector<8x1xf32> to vector<8x128xf32>
    %206 = vector.broadcast %204 : vector<1x128xf32> to vector<8x128xf32>
    %207 = arith.mulf %205, %206 : vector<8x128xf32>
    %208 = arith.addf %202, %207 : vector<8x128xf32>
    %209 = vector.extract_strided_slice %126 {offsets = [0, 13], sizes = [8, 1], strides = [1, 1]} : vector<8x16xf32> to vector<8x1xf32>
    %210 = vector.extract_strided_slice %127 {offsets = [13, 0], sizes = [1, 128], strides = [1, 1]} : vector<16x128xf32> to vector<1x128xf32>
    %211 = vector.broadcast %209 : vector<8x1xf32> to vector<8x128xf32>
    %212 = vector.broadcast %210 : vector<1x128xf32> to vector<8x128xf32>
    %213 = arith.mulf %211, %212 : vector<8x128xf32>
    %214 = arith.addf %208, %213 : vector<8x128xf32>
    %215 = vector.extract_strided_slice %126 {offsets = [0, 14], sizes = [8, 1], strides = [1, 1]} : vector<8x16xf32> to vector<8x1xf32>
    %216 = vector.extract_strided_slice %127 {offsets = [14, 0], sizes = [1, 128], strides = [1, 1]} : vector<16x128xf32> to vector<1x128xf32>
    %217 = vector.broadcast %215 : vector<8x1xf32> to vector<8x128xf32>
    %218 = vector.broadcast %216 : vector<1x128xf32> to vector<8x128xf32>
    %219 = arith.mulf %217, %218 : vector<8x128xf32>
    %220 = arith.addf %214, %219 : vector<8x128xf32>
    %221 = vector.extract_strided_slice %126 {offsets = [0, 15], sizes = [8, 1], strides = [1, 1]} : vector<8x16xf32> to vector<8x1xf32>
    %222 = vector.extract_strided_slice %127 {offsets = [15, 0], sizes = [1, 128], strides = [1, 1]} : vector<16x128xf32> to vector<1x128xf32>
    %223 = vector.broadcast %221 : vector<8x1xf32> to vector<8x128xf32>
    %224 = vector.broadcast %222 : vector<1x128xf32> to vector<8x128xf32>
    %225 = arith.mulf %223, %224 : vector<8x128xf32>
    %226 = arith.addf %220, %225 : vector<8x128xf32>
    %cst_11 = arith.constant 0.000000e+00 : f32
    %227 = vector.broadcast %cst_11 : f32 to vector<8x128xf32>
    %228 = arith.subf %227, %226 : vector<8x128xf32>
    %229 = math.exp %228 : vector<8x128xf32>
    %cst_12 = arith.constant 1.000000e+00 : f32
    %230 = vector.broadcast %cst_12 : f32 to vector<8x128xf32>
    %231 = arith.addf %230, %229 : vector<8x128xf32>
    %232 = tpu.reciprocal %231 {approx = true} : vector<8x128xf32> -> vector<8x128xf32>
    %c0_13 = arith.constant 0 : index
    %c0_14 = arith.constant 0 : index
    %233 = vector.load %arg3[%c0_13, %c0_14] : memref<8x128xf32, #tpu.memory_space<vmem>>, vector<8x128xf32>
    tpu.vector_store %arg3[%c0_13, %c0_14], %232 {strides = array<i32>} : memref<8x128xf32, #tpu.memory_space<vmem>>, vector<8x128xf32>,
    return
  }
  func.func @transform_0(%arg0: i32) -> (i32, i32) {
    %c0_i32 = arith.constant 0 : i32
    %c0_i32_0 = arith.constant 0 : i32
    return %arg0, %c0_i32 : i32, i32
  }
  func.func @transform_1(%arg0: i32) -> (i32, i32) {
    %c0_i32 = arith.constant 0 : i32
    %c0_i32_0 = arith.constant 0 : i32
    %c0_i32_1 = arith.constant 0 : i32
    return %c0_i32, %c0_i32_0 : i32, i32
  }
  func.func @transform_2(%arg0: i32) -> (i32, i32) {
    %c0_i32 = arith.constant 0 : i32
    %c0_i32_0 = arith.constant 0 : i32
    return %arg0, %c0_i32 : i32, i32
  }
}

</mosaic_0001>

<llo_original>
// kernel: discriminator_forward.1
$region0: #{discriminator_forward.1}
  #allocation0 [shape = 'u32[]', space=smem, size = 0x4, offset = 0x4, fixed_abs, tag = 'smem constant byte address 0x4 - core index']
  #allocation1 [shape = 'u32[144,128]{1,0:T(1,128)}', space=vmem, size = 0x12000, scoped, tag = 'internal scratch']
  %s0 = inlined_call_operand.vmem [shape: f32[8,2], index: 0, kind: input, shape index: {}]
  %s1 = inlined_call_operand.vmem [shape: f32[64,128], index: 1, kind: input, shape index: {}]
  %s2 = inlined_call_operand.vmem [shape: f32[8,128], index: 2, kind: output, shape index: {}]
  %s3 = sld [smem:[#allocation0]]
  $region18: #{discriminator_forward.1} parent=0
    _
  %s5 = ssub.s32 1, %s3
  %s6 = scalar_select 0, %s5, %s3
  // Predicated region
  $region2: #{discriminator_forward.1} parent=0 // pred_check
    _
  $region3: #{discriminator_forward.1} parent=0 // pred_check_branch
    %8 = sbr.rel (0) target = $region5
  $region4: #{discriminator_forward.1} parent=0 // pred_region
    _
  $region5: #{discriminator_forward.1} parent=0 // pred_fallthru
    _
  // Predicated region
  $region6: #{discriminator_forward.1} parent=0 // pred_check
    _
  $region7: #{discriminator_forward.1} parent=0 // pred_check_branch
    %10 = sbr.rel (0) target = $region9
  $region8: #{discriminator_forward.1} parent=0 // pred_region
    _
  $region9: #{discriminator_forward.1} parent=0 // pred_fallthru
    _
  %v11 = vld [vmem:[%s0] sm:$0xff]
  %v12 = vld [vmem:[%s1] sm:$0x3]
  %v13 = vld [vmem:[%s1 + $0x8] sm:$0x1]
  %v14 = vlaneseq
  %v15 = vshrl.u32 %v14, 7
  %v16 = vsub.s32 0, %v15
  %v17 = vrot.slane %v13, %v16
  %19 = vset.pattern.permute.xlu0 0
  %20 = vperm.xlu0 %19, %v11
  %v21 = vpop.permute.xlu0 %20
  %v23 = vlaneseq
  %v24 = vshrl.u32 %v23, 7
  %v25 = vsub.s32 0, %v24
  %v26 = vrot.slane %v12, %v25
  %v27 = vmul.f32 %v21, %v26
  %v28 = vadd.f32 %v17, %v27
  %29 = vset.pattern.permute.xlu0 1
  %30 = vperm.xlu0 %29, %v11
  %v31 = vpop.permute.xlu0 %30
  %v33 = vlaneseq
  %v34 = vshrl.u32 %v33, 7
  %v35 = vsub.s32 1, %v34
  %v36 = vrot.slane %v12, %v35
  %v37 = vmul.f32 %v31, %v36
  %v38 = vadd.f32 %v28, %v37
  %vm39 = vcmp.gt.f32.partialorder %v38, 0.0
  %v40 = vmul.f32 %v38, 0.2
  %v41 = vsel %vm39, %v38, %v40
  %v42 = vld [vmem:[%s1 + $0x10] sm:$0xff]
  %v43 = vld [vmem:[%s1 + $0x18] sm:$0xff]
  %v44 = vld [vmem:[%s1 + $0x20] sm:$0x1]
  %v45 = vlaneseq
  %v46 = vshrl.u32 %v45, 7
  %v47 = vsub.s32 0, %v46
  %v48 = vrot.slane %v44, %v47
  %50 = vset.pattern.permute.xlu0 0
  %51 = vperm.xlu0 %50, %v41
  %v52 = vpop.permute.xlu0 %51
  %v54 = vlaneseq
  %v55 = vshrl.u32 %v54, 7
  %v56 = vsub.s32 0, %v55
  %v57 = vrot.slane %v42, %v56
  %v58 = vmul.f32 %v52, %v57
  %v59 = vadd.f32 %v48, %v58
  %60 = vset.pattern.permute.xlu0 1
  %61 = vperm.xlu0 %60, %v41
  %v62 = vpop.permute.xlu0 %61
  %v64 = vlaneseq
  %v65 = vshrl.u32 %v64, 7
  %v66 = vsub.s32 1, %v65
  %v67 = vrot.slane %v42, %v66
  %v68 = vmul.f32 %v62, %v67
  %v69 = vadd.f32 %v59, %v68
  %70 = vset.pattern.permute.xlu0 2
  %71 = vperm.xlu0 %70, %v41
  %v72 = vpop.permute.xlu0 %71
  %v74 = vlaneseq
  %v75 = vshrl.u32 %v74, 7
  %v76 = vsub.s32 2, %v75
  %v77 = vrot.slane %v42, %v76
  %v78 = vmul.f32 %v72, %v77
  %v79 = vadd.f32 %v69, %v78
  %80 = vset.pattern.permute.xlu0 3
  %81 = vperm.xlu0 %80, %v41
  %v82 = vpop.permute.xlu0 %81
  %v84 = vlaneseq
  %v85 = vshrl.u32 %v84, 7
  %v86 = vsub.s32 3, %v85
  %v87 = vrot.slane %v42, %v86
  %v88 = vmul.f32 %v82, %v87
  %v89 = vadd.f32 %v79, %v88
  %90 = vset.pattern.permute.xlu0 4
  %91 = vperm.xlu0 %90, %v41
  %v92 = vpop.permute.xlu0 %91
  %v94 = vlaneseq
  %v95 = vshrl.u32 %v94, 7
  %v96 = vsub.s32 4, %v95
  %v97 = vrot.slane %v42, %v96
  %v98 = vmul.f32 %v92, %v97
  %v99 = vadd.f32 %v89, %v98
  %100 = vset.pattern.permute.xlu0 5
  %101 = vperm.xlu0 %100, %v41
  %v102 = vpop.permute.xlu0 %101
  %v104 = vlaneseq
  %v105 = vshrl.u32 %v104, 7
  %v106 = vsub.s32 5, %v105
  %v107 = vrot.slane %v42, %v106
  %v108 = vmul.f32 %v102, %v107
  %v109 = vadd.f32 %v99, %v108
  %110 = vset.pattern.permute.xlu0 6
  %111 = vperm.xlu0 %110, %v41
  %v112 = vpop.permute.xlu0 %111
  %v114 = vlaneseq
  %v115 = vshrl.u32 %v114, 7
  %v116 = vsub.s32 6, %v115
  %v117 = vrot.slane %v42, %v116
  %v118 = vmul.f32 %v112, %v117
  %v119 = vadd.f32 %v109, %v118
  %120 = vset.pattern.permute.xlu0 7
  %121 = vperm.xlu0 %120, %v41
  %v122 = vpop.permute.xlu0 %121
  %v124 = vlaneseq
  %v125 = vshrl.u32 %v124, 7
  %v126 = vsub.s32 7, %v125
  %v127 = vrot.slane %v42, %v126
  %v128 = vmul.f32 %v122, %v127
  %v129 = vadd.f32 %v119, %v128
  %130 = vset.pattern.permute.xlu0 8
  %131 = vperm.xlu0 %130, %v41
  %v132 = vpop.permute.xlu0 %131
  %v134 = vlaneseq
  %v135 = vshrl.u32 %v134, 7
  %v136 = vsub.s32 0, %v135
  %v137 = vrot.slane %v43, %v136
  %v138 = vmul.f32 %v132, %v137
  %v139 = vadd.f32 %v129, %v138
  %140 = vset.pattern.permute.xlu0 9
  %141 = vperm.xlu0 %140, %v41
  %v142 = vpop.permute.xlu0 %141
  %v144 = vlaneseq
  %v145 = vshrl.u32 %v144, 7
  %v146 = vsub.s32 1, %v145
  %v147 = vrot.slane %v43, %v146
  %v148 = vmul.f32 %v142, %v147
  %v149 = vadd.f32 %v139, %v148
  %150 = vset.pattern.permute.xlu0 10
  %151 = vperm.xlu0 %150, %v41
  %v152 = vpop.permute.xlu0 %151
  %v154 = vlaneseq
  %v155 = vshrl.u32 %v154, 7
  %v156 = vsub.s32 2, %v155
  %v157 = vrot.slane %v43, %v156
  %v158 = vmul.f32 %v152, %v157
  %v159 = vadd.f32 %v149, %v158
  %160 = vset.pattern.permute.xlu0 11
  %161 = vperm.xlu0 %160, %v41
  %v162 = vpop.permute.xlu0 %161
  %v164 = vlaneseq
  %v165 = vshrl.u32 %v164, 7
  %v166 = vsub.s32 3, %v165
  %v167 = vrot.slane %v43, %v166
  %v168 = vmul.f32 %v162, %v167
  %v169 = vadd.f32 %v159, %v168
  %170 = vset.pattern.permute.xlu0 12
  %171 = vperm.xlu0 %170, %v41
  %v172 = vpop.permute.xlu0 %171
  %v174 = vlaneseq
  %v175 = vshrl.u32 %v174, 7
  %v176 = vsub.s32 4, %v175
  %v177 = vrot.slane %v43, %v176
  %v178 = vmul.f32 %v172, %v177
  %v179 = vadd.f32 %v169, %v178
  %180 = vset.pattern.permute.xlu0 13
  %181 = vperm.xlu0 %180, %v41
  %v182 = vpop.permute.xlu0 %181
  %v184 = vlaneseq
  %v185 = vshrl.u32 %v184, 7
  %v186 = vsub.s32 5, %v185
  %v187 = vrot.slane %v43, %v186
  %v188 = vmul.f32 %v182, %v187
  %v189 = vadd.f32 %v179, %v188
  %190 = vset.pattern.permute.xlu0 14
  %191 = vperm.xlu0 %190, %v41
  %v192 = vpop.permute.xlu0 %191
  %v194 = vlaneseq
  %v195 = vshrl.u32 %v194, 7
  %v196 = vsub.s32 6, %v195
  %v197 = vrot.slane %v43, %v196
  %v198 = vmul.f32 %v192, %v197
  %v199 = vadd.f32 %v189, %v198
  %200 = vset.pattern.permute.xlu0 15
  %201 = vperm.xlu0 %200, %v41
  %v202 = vpop.permute.xlu0 %201
  %v204 = vlaneseq
  %v205 = vshrl.u32 %v204, 7
  %v206 = vsub.s32 7, %v205
  %v207 = vrot.slane %v43, %v206
  %v208 = vmul.f32 %v202, %v207
  %v209 = vadd.f32 %v199, %v208
  %vm210 = vcmp.gt.f32.partialorder %v209, 0.0
  %v211 = vmul.f32 %v209, 0.2
  %v212 = vsel %vm210, %v209, %v211
  %v213 = vld [vmem:[%s1 + $0x28] sm:$0xff]
  %v214 = vld [vmem:[%s1 + $0x30] sm:$0xff]
  %v215 = vld [vmem:[%s1 + $0x38] sm:$0x1]
  %v216 = vlaneseq
  %v217 = vshrl.u32 %v216, 7
  %v218 = vsub.s32 0, %v217
  %v219 = vrot.slane %v215, %v218
  %221 = vset.pattern.permute.xlu0 0
  %222 = vperm.xlu0 %221, %v212
  %v223 = vpop.permute.xlu0 %222
  %v225 = vlaneseq
  %v226 = vshrl.u32 %v225, 7
  %v227 = vsub.s32 0, %v226
  %v228 = vrot.slane %v213, %v227
  %v229 = vmul.f32 %v223, %v228
  %v230 = vadd.f32 %v219, %v229
  %231 = vset.pattern.permute.xlu0 1
  %232 = vperm.xlu0 %231, %v212
  %v233 = vpop.permute.xlu0 %232
  %v235 = vlaneseq
  %v236 = vshrl.u32 %v235, 7
  %v237 = vsub.s32 1, %v236
  %v238 = vrot.slane %v213, %v237
  %v239 = vmul.f32 %v233, %v238
  %v240 = vadd.f32 %v230, %v239
  %241 = vset.pattern.permute.xlu0 2
  %242 = vperm.xlu0 %241, %v212
  %v243 = vpop.permute.xlu0 %242
  %v245 = vlaneseq
  %v246 = vshrl.u32 %v245, 7
  %v247 = vsub.s32 2, %v246
  %v248 = vrot.slane %v213, %v247
  %v249 = vmul.f32 %v243, %v248
  %v250 = vadd.f32 %v240, %v249
  %251 = vset.pattern.permute.xlu0 3
  %252 = vperm.xlu0 %251, %v212
  %v253 = vpop.permute.xlu0 %252
  %v255 = vlaneseq
  %v256 = vshrl.u32 %v255, 7
  %v257 = vsub.s32 3, %v256
  %v258 = vrot.slane %v213, %v257
  %v259 = vmul.f32 %v253, %v258
  %v260 = vadd.f32 %v250, %v259
  %261 = vset.pattern.permute.xlu0 4
  %262 = vperm.xlu0 %261, %v212
  %v263 = vpop.permute.xlu0 %262
  %v265 = vlaneseq
  %v266 = vshrl.u32 %v265, 7
  %v267 = vsub.s32 4, %v266
  %v268 = vrot.slane %v213, %v267
  %v269 = vmul.f32 %v263, %v268
  %v270 = vadd.f32 %v260, %v269
  %271 = vset.pattern.permute.xlu0 5
  %272 = vperm.xlu0 %271, %v212
  %v273 = vpop.permute.xlu0 %272
  %v275 = vlaneseq
  %v276 = vshrl.u32 %v275, 7
  %v277 = vsub.s32 5, %v276
  %v278 = vrot.slane %v213, %v277
  %v279 = vmul.f32 %v273, %v278
  %v280 = vadd.f32 %v270, %v279
  %281 = vset.pattern.permute.xlu0 6
  %282 = vperm.xlu0 %281, %v212
  %v283 = vpop.permute.xlu0 %282
  %v285 = vlaneseq
  %v286 = vshrl.u32 %v285, 7
  %v287 = vsub.s32 6, %v286
  %v288 = vrot.slane %v213, %v287
  %v289 = vmul.f32 %v283, %v288
  %v290 = vadd.f32 %v280, %v289
  %291 = vset.pattern.permute.xlu0 7
  %292 = vperm.xlu0 %291, %v212
  %v293 = vpop.permute.xlu0 %292
  %v295 = vlaneseq
  %v296 = vshrl.u32 %v295, 7
  %v297 = vsub.s32 7, %v296
  %v298 = vrot.slane %v213, %v297
  %v299 = vmul.f32 %v293, %v298
  %v300 = vadd.f32 %v290, %v299
  %301 = vset.pattern.permute.xlu0 8
  %302 = vperm.xlu0 %301, %v212
  %v303 = vpop.permute.xlu0 %302
  %v305 = vlaneseq
  %v306 = vshrl.u32 %v305, 7
  %v307 = vsub.s32 0, %v306
  %v308 = vrot.slane %v214, %v307
  %v309 = vmul.f32 %v303, %v308
  %v310 = vadd.f32 %v300, %v309
  %311 = vset.pattern.permute.xlu0 9
  %312 = vperm.xlu0 %311, %v212
  %v313 = vpop.permute.xlu0 %312
  %v315 = vlaneseq
  %v316 = vshrl.u32 %v315, 7
  %v317 = vsub.s32 1, %v316
  %v318 = vrot.slane %v214, %v317
  %v319 = vmul.f32 %v313, %v318
  %v320 = vadd.f32 %v310, %v319
  %321 = vset.pattern.permute.xlu0 10
  %322 = vperm.xlu0 %321, %v212
  %v323 = vpop.permute.xlu0 %322
  %v325 = vlaneseq
  %v326 = vshrl.u32 %v325, 7
  %v327 = vsub.s32 2, %v326
  %v328 = vrot.slane %v214, %v327
  %v329 = vmul.f32 %v323, %v328
  %v330 = vadd.f32 %v320, %v329
  %331 = vset.pattern.permute.xlu0 11
  %332 = vperm.xlu0 %331, %v212
  %v333 = vpop.permute.xlu0 %332
  %v335 = vlaneseq
  %v336 = vshrl.u32 %v335, 7
  %v337 = vsub.s32 3, %v336
  %v338 = vrot.slane %v214, %v337
  %v339 = vmul.f32 %v333, %v338
  %v340 = vadd.f32 %v330, %v339
  %341 = vset.pattern.permute.xlu0 12
  %342 = vperm.xlu0 %341, %v212
  %v343 = vpop.permute.xlu0 %342
  %v345 = vlaneseq
  %v346 = vshrl.u32 %v345, 7
  %v347 = vsub.s32 4, %v346
  %v348 = vrot.slane %v214, %v347
  %v349 = vmul.f32 %v343, %v348
  %v350 = vadd.f32 %v340, %v349
  %351 = vset.pattern.permute.xlu0 13
  %352 = vperm.xlu0 %351, %v212
  %v353 = vpop.permute.xlu0 %352
  %v355 = vlaneseq
  %v356 = vshrl.u32 %v355, 7
  %v357 = vsub.s32 5, %v356
  %v358 = vrot.slane %v214, %v357
  %v359 = vmul.f32 %v353, %v358
  %v360 = vadd.f32 %v350, %v359
  %361 = vset.pattern.permute.xlu0 14
  %362 = vperm.xlu0 %361, %v212
  %v363 = vpop.permute.xlu0 %362
  %v365 = vlaneseq
  %v366 = vshrl.u32 %v365, 7
  %v367 = vsub.s32 6, %v366
  %v368 = vrot.slane %v214, %v367
  %v369 = vmul.f32 %v363, %v368
  %v370 = vadd.f32 %v360, %v369
  %371 = vset.pattern.permute.xlu0 15
  %372 = vperm.xlu0 %371, %v212
  %v373 = vpop.permute.xlu0 %372
  %v375 = vlaneseq
  %v376 = vshrl.u32 %v375, 7
  %v377 = vsub.s32 7, %v376
  %v378 = vrot.slane %v214, %v377
  %v379 = vmul.f32 %v373, %v378
  %v380 = vadd.f32 %v370, %v379
  %v381 = vsub.f32 0.0, %v380
  %v382 = vmul.f32 %v381, 1.442695
  %v383 = vpow.pop %v382
  %v384 = vadd.f32 %v383, 1.0
  %v385 = vrcp.pop %v384
  %386 = vst [vmem:[%s2] sm:$0xff] %v385
  // Predicated region
  $region10: #{discriminator_forward.1} parent=0 // pred_check
    _
  $region11: #{discriminator_forward.1} parent=0 // pred_check_branch
    %388 = sbr.rel (0) target = $region13
  $region12: #{discriminator_forward.1} parent=0 // pred_region
    _
  $region13: #{discriminator_forward.1} parent=0 // pred_fallthru
    _
  // Predicated region
  $region14: #{discriminator_forward.1} parent=0 // pred_check
    _
  $region15: #{discriminator_forward.1} parent=0 // pred_check_branch
    %390 = sbr.rel (0) target = $region17
  $region16: #{discriminator_forward.1} parent=0 // pred_region
    _
  $region17: #{discriminator_forward.1} parent=0 // pred_fallthru
    _

</llo_original>
